<compile_context>
chip_gen: v6e
topology: v6e:2x2x1
jax: 0.10.0
libtpu: 0.0.40
codegen_flags: <defaults>
</compile_context>

<pallas_src>
import functools

import jax
import jax.numpy as jnp
from jax.experimental import pallas as pl
from jax.experimental.pallas import tpu as pltpu


def bss_kernel(s_ref, t_ref, o_ref, *, inv_T):
    # One (tile_n, C) tile of student / teacher logits per grid step.
    s = s_ref[...].astype(jnp.float32) * inv_T
    t = t_ref[...].astype(jnp.float32) * inv_T

    # log_softmax over classes (lane axis) for student logits.
    s_shift = s - jnp.max(s, axis=1, keepdims=True)
    log_p_s = s_shift - jnp.log(jnp.sum(jnp.exp(s_shift), axis=1, keepdims=True))

    # softmax (and its log) over classes for teacher logits.
    t_shift = t - jnp.max(t, axis=1, keepdims=True)
    t_exp = jnp.exp(t_shift)
    t_sum = jnp.sum(t_exp, axis=1, keepdims=True)
    log_p_t = t_shift - jnp.log(t_sum)
    # Reciprocal only on the (tile_n, 1) column; the broadcast multiply replaces
    # the old full-tile divide.  approx=False keeps exact agreement with the
    # pure-JAX reference at 1e-5 tolerances.
    p_t = t_exp * pl.reciprocal(t_sum, approx=False)

    # F.kl_div(input=log_p_s, target=p_t): per-element p_t * (log p_t - log p_s).
    kl = p_t * (log_p_t - log_p_s)

    # Per-row partial sums; the cheap final reduce + /N happens in the wrapper.
    o_ref[...] = jnp.sum(kl, axis=1, keepdims=True)


def _pick_tile_rows(n, c, itemsize):
    """Largest batch tile (multiple of 8) that keeps the pipelined inputs
    (2 arrays x 2 buffers) comfortably inside the smallest default scoped VMEM."""
    budget_bytes = 4 * 1024 * 1024          # headroom vs. v5e's 16 MiB default
    bytes_per_row = 2 * 2 * c * itemsize     # 2 inputs x 2 pipeline buffers
    tile = budget_bytes // max(bytes_per_row, 1)
    tile = max(8, min(1024, tile))
    tile = (tile // 8) * 8
    n_rounded = ((n + 7) // 8) * 8
    return max(8, min(tile, n_rounded))


def bss_loss(attacked_out_s, attacked_out_t, T, *, tile_rows=None):
    n, c = attacked_out_s.shape
    assert attacked_out_t.shape == (n, c)

    if tile_rows is None:
        tile_rows = _pick_tile_rows(n, c, jnp.dtype(attacked_out_s.dtype).itemsize)
    tile_rows = max(8, (int(tile_rows) // 8) * 8)

    num_tiles = pl.cdiv(n, tile_rows)
    n_pad = num_tiles * tile_rows
    if n_pad != n:
        # Identical zero rows in s and t => log_p_s == log_p_t => 0 KL contribution.
        pad = ((0, n_pad - n), (0, 0))
        attacked_out_s = jnp.pad(attacked_out_s, pad)
        attacked_out_t = jnp.pad(attacked_out_t, pad)

    kernel = functools.partial(bss_kernel, inv_T=float(1.0 / T))

    row_kl = pl.pallas_call(
        kernel,
        out_shape=jax.ShapeDtypeStruct((n_pad, 1), jnp.float32),
        grid=(num_tiles,),
        in_specs=[
            pl.BlockSpec((tile_rows, c), lambda i: (i, 0)),
            pl.BlockSpec((tile_rows, c), lambda i: (i, 0)),
        ],
        out_specs=pl.BlockSpec((tile_rows, 1), lambda i: (i, 0)),
        compiler_params=pltpu.CompilerParams(
            dimension_semantics=("parallel",),
        ),
    )(attacked_out_s, attacked_out_t)

    # 'batchmean': sum over all (row, class) terms divided by the batch size.
    return jnp.sum(row_kl) / n


def bss_loss_ref(s, t, T):
    # Pure-JAX reference for sanity checking.
    log_p_s = jax.nn.log_softmax(s / T, axis=1)
    p_t = jax.nn.softmax(t / T, axis=1)
    log_p_t = jax.nn.log_softmax(t / T, axis=1)
    return jnp.sum(p_t * (log_p_t - log_p_s)) / s.shape[0]


if __name__ == "__main__":
    T = 4.0
    key = jax.random.PRNGKey(0)
    k1, k2, k3, k4 = jax.random.split(key, 4)

    # Small case matching the module (batch=8, classes=32 attacked logits).
    attacked_out_s = jax.random.normal(k1, (8, 32), dtype=jnp.float32)
    attacked_out_t = jax.random.normal(k2, (8, 32), dtype=jnp.float32)

    loss = bss_loss(attacked_out_s, attacked_out_t, T)
    jax.block_until_ready(loss)
    ref = bss_loss_ref(attacked_out_s, attacked_out_t, T)
    assert jnp.allclose(loss, ref, atol=1e-5, rtol=1e-5), (loss, ref)

    # Multi-tile + padding path: batch not a multiple of the tile, several tiles.
    s_big = jax.random.normal(k3, (300, 32), dtype=jnp.float32)
    t_big = jax.random.normal(k4, (300, 32), dtype=jnp.float32)
    loss_big = bss_loss(s_big, t_big, T, tile_rows=128)
    jax.block_until_ready(loss_big)
    ref_big = bss_loss_ref(s_big, t_big, T)
    assert jnp.allclose(loss_big, ref_big, atol=1e-5, rtol=1e-5), (loss_big, ref_big)

    print("KERNEL_OK")
</pallas_src>

<mosaic_0001>
module attributes {stable_mosaic.version = 11 : i64} {
  func.func @bss_kernel(%arg0: i32, %arg1: memref<8x32xf32, #tpu.memory_space<vmem>>, %arg2: memref<8x32xf32, #tpu.memory_space<vmem>>, %arg3: memref<8x1xf32, #tpu.memory_space<vmem>>) attributes {dimension_semantics = [#tpu.dimension_semantics<parallel>], iteration_bounds = array<i64: 1>, scalar_prefetch = 0 : i64, scratch_operands = 0 : i64, tpu.core_type = #tpu.core_type<tc>, window_params = [{transform_indices = @transform_0, window_bounds = array<i64: 8, 32>}, {transform_indices = @transform_1, window_bounds = array<i64: 8, 32>}, {transform_indices = @transform_2, window_bounds = array<i64: 8, 1>}]} {
    %c0 = arith.constant 0 : index
    %c0_0 = arith.constant 0 : index
    %0 = vector.load %arg1[%c0, %c0_0] : memref<8x32xf32, #tpu.memory_space<vmem>>, vector<8x32xf32>
    %cst = arith.constant 2.500000e-01 : f32
    %1 = vector.broadcast %cst : f32 to vector<8x32xf32>
    %2 = arith.mulf %0, %1 : vector<8x32xf32>
    %c0_1 = arith.constant 0 : index
    %c0_2 = arith.constant 0 : index
    %3 = vector.load %arg2[%c0_1, %c0_2] : memref<8x32xf32, #tpu.memory_space<vmem>>, vector<8x32xf32>
    %cst_3 = arith.constant 2.500000e-01 : f32
    %4 = vector.broadcast %cst_3 : f32 to vector<8x32xf32>
    %5 = arith.mulf %3, %4 : vector<8x32xf32>
    %cst_4 = arith.constant dense<0xFF800000> : vector<8xf32>
    %6 = vector.multi_reduction <maximumf>, %2, %cst_4 [1] : vector<8x32xf32> to vector<8xf32>
    %7 = vector.shape_cast %6 : vector<8xf32> to vector<8x1xf32>
    %8 = vector.broadcast %7 : vector<8x1xf32> to vector<8x32xf32>
    %9 = arith.subf %2, %8 : vector<8x32xf32>
    %10 = math.exp %9 : vector<8x32xf32>
    %cst_5 = arith.constant dense<0.000000e+00> : vector<8xf32>
    %11 = vector.multi_reduction <add>, %10, %cst_5 [1] : vector<8x32xf32> to vector<8xf32>
    %12 = vector.shape_cast %11 : vector<8xf32> to vector<8x1xf32>
    %13 = math.log %12 : vector<8x1xf32>
    %14 = vector.broadcast %13 : vector<8x1xf32> to vector<8x32xf32>
    %15 = arith.subf %9, %14 : vector<8x32xf32>
    %cst_6 = arith.constant dense<0xFF800000> : vector<8xf32>
    %16 = vector.multi_reduction <maximumf>, %5, %cst_6 [1] : vector<8x32xf32> to vector<8xf32>
    %17 = vector.shape_cast %16 : vector<8xf32> to vector<8x1xf32>
    %18 = vector.broadcast %17 : vector<8x1xf32> to vector<8x32xf32>
    %19 = arith.subf %5, %18 : vector<8x32xf32>
    %20 = math.exp %19 : vector<8x32xf32>
    %cst_7 = arith.constant dense<0.000000e+00> : vector<8xf32>
    %21 = vector.multi_reduction <add>, %20, %cst_7 [1] : vector<8x32xf32> to vector<8xf32>
    %22 = vector.shape_cast %21 : vector<8xf32> to vector<8x1xf32>
    %23 = math.log %22 : vector<8x1xf32>
    %24 = vector.broadcast %23 : vector<8x1xf32> to vector<8x32xf32>
    %25 = arith.subf %19, %24 : vector<8x32xf32>
    %26 = tpu.reciprocal %22 : vector<8x1xf32> -> vector<8x1xf32>
    %27 = vector.broadcast %26 : vector<8x1xf32> to vector<8x32xf32>
    %28 = arith.mulf %20, %27 : vector<8x32xf32>
    %29 = arith.subf %25, %15 : vector<8x32xf32>
    %30 = arith.mulf %28, %29 : vector<8x32xf32>
    %cst_8 = arith.constant dense<0.000000e+00> : vector<8xf32>
    %31 = vector.multi_reduction <add>, %30, %cst_8 [1] : vector<8x32xf32> to vector<8xf32>
    %32 = vector.shape_cast %31 : vector<8xf32> to vector<8x1xf32>
    %c0_9 = arith.constant 0 : index
    %c0_10 = arith.constant 0 : index
    %33 = vector.load %arg3[%c0_9, %c0_10] : memref<8x1xf32, #tpu.memory_space<vmem>>, vector<8x1xf32>
    tpu.vector_store %arg3[%c0_9, %c0_10], %32 {strides = array<i32>} : memref<8x1xf32, #tpu.memory_space<vmem>>, vector<8x1xf32>,
    return
  }
  func.func @transform_0(%arg0: i32) -> (i32, i32) {
    %c0_i32 = arith.constant 0 : i32
    %c0_i32_0 = arith.constant 0 : i32
    return %arg0, %c0_i32 : i32, i32
  }
  func.func @transform_1(%arg0: i32) -> (i32, i32) {
    %c0_i32 = arith.constant 0 : i32
    %c0_i32_0 = arith.constant 0 : i32
    return %arg0, %c0_i32 : i32, i32
  }
  func.func @transform_2(%arg0: i32) -> (i32, i32) {
    %c0_i32 = arith.constant 0 : i32
    %c0_i32_0 = arith.constant 0 : i32
    return %arg0, %c0_i32 : i32, i32
  }
}

</mosaic_0001>

<llo_original>
// kernel: tpu_custom_call.1
$region0: #{tpu_custom_call.1}
  #allocation0 [shape = 'u32[]', space=smem, size = 0x4, offset = 0x4, fixed_abs, tag = 'smem constant byte address 0x4 - core index']
  #allocation1 [shape = 'u32[144,128]{1,0:T(1,128)}', space=vmem, size = 0x12000, scoped, tag = 'internal scratch']
  %s0 = inlined_call_operand.hbm [shape: f32[8,32], index: 0, kind: input, shape index: {}]
  %s1 = inlined_call_operand.hbm [shape: f32[8,32], index: 1, kind: input, shape index: {}]
  %s2 = inlined_call_operand.vmem [shape: f32[8,1], index: 2, kind: output, shape index: {}]
  %s3 = sld [smem:[#allocation0]]
  $region26: #{tpu_custom_call.1} parent=0
    _
  %s5 = ssub.s32 1, %s3
  %s6 = scalar_select 0, %s5, %s3
  $region1: #{tpu_custom_call.1} parent=0
    #allocation2 [shape = 'u8[4096]{0}', space=vmem, size = 0x1000, scoped, tag = 'input window, operand 0, single buffered']
    #allocation3 [shape = 's32[1]{0}', space=sflag, size = 0x4, scoped, tag = 'scoped memory for tpu_custom_call.1']
    #allocation4 [shape = 'u8[4096]{0}', space=vmem, size = 0x1000, scoped, tag = 'input window, operand 1, single buffered']
    #allocation5 [shape = 's32[1]{0}', space=sflag, size = 0x4, scoped, tag = 'scoped memory for tpu_custom_call.1']
    %7 = vsyncpa [#allocation3], 0
    %8 = vsyncpa [#allocation5], 0
    // Predicated region
    $region2: #{tpu_custom_call.1} parent=1 // pred_check
      _
    $region3: #{tpu_custom_call.1} parent=1 // pred_check_branch
      %10 = sbr.rel (0) target = $region5
    $region4: #{tpu_custom_call.1} parent=1 // pred_region
      %s12 = ssub.s32 128, 128
      %13 = vsyncadd [#allocation3], %s12
      %s15 = sshll.u32 [#allocation2], 4
      %s16 = int_to_ptr.vmem [resolvable:$true] %s15
      %18 = dma.hbm_to_vmem [thread:$0]  %s0, 128, %s16, [#allocation3]
    $region5: #{tpu_custom_call.1} parent=1 // pred_fallthru
      _
    // Predicated region
    $region6: #{tpu_custom_call.1} parent=1 // pred_check
      _
    $region7: #{tpu_custom_call.1} parent=1 // pred_check_branch
      %20 = sbr.rel (0) target = $region9
    $region8: #{tpu_custom_call.1} parent=1 // pred_region
      %s22 = ssub.s32 128, 128
      %23 = vsyncadd [#allocation5], %s22
      %s25 = sshll.u32 [#allocation4], 4
      %s26 = int_to_ptr.vmem [resolvable:$true] %s25
      %28 = dma.hbm_to_vmem [thread:$0]  %s1, 128, %s26, [#allocation5]
    $region9: #{tpu_custom_call.1} parent=1 // pred_fallthru
      _
    // Predicated region
    $region10: #{tpu_custom_call.1} parent=1 // pred_check
      _
    $region11: #{tpu_custom_call.1} parent=1 // pred_check_branch
      %30 = sbr.rel (0) target = $region13
    $region12: #{tpu_custom_call.1} parent=1 // pred_region
      %31 = dma.done [#allocation3], 128
    $region13: #{tpu_custom_call.1} parent=1 // pred_fallthru
      _
    // Predicated region
    $region14: #{tpu_custom_call.1} parent=1 // pred_check
      _
    $region15: #{tpu_custom_call.1} parent=1 // pred_check_branch
      %33 = sbr.rel (0) target = $region17
    $region16: #{tpu_custom_call.1} parent=1 // pred_region
      %34 = dma.done [#allocation5], 128
    $region17: #{tpu_custom_call.1} parent=1 // pred_fallthru
      _
    %v35 = vld [vmem:[#allocation2] sm:$0xff]
    %v36 = vmul.f32 %v35, 0.25
    %v37 = vld [vmem:[#allocation4] sm:$0xff]
    %v38 = vmul.f32 %v37, 0.25
    %vm39 = vcmask 261120
    %v40 = vsel %vm39, %v36, -inf
    %41 = vmax.xlane.f32.xlu0 %v40
    %v42 = vpop.xlane.xlu0 %41
    %v43 = vsub.f32 %v36, %v42
    %v44 = vmul.f32 %v43, 1.442695
    %v45 = vpow.pop %v44
    %v46 = vsel %vm39, %v45, 0.0
    %47 = vadd.xlane.f32.xlu0 %v46
    %v48 = vpop.xlane.xlu0 %47
    %v49 = vlog2.pop %v48
    %v50 = vmul.f32 %v49, 0.6931472
    %v51 = vsub.f32 %v43, %v50
    %v52 = vsel %vm39, %v38, -inf
    %53 = vmax.xlane.f32.xlu0 %v52
    %v54 = vpop.xlane.xlu0 %53
    %v55 = vsub.f32 %v38, %v54
    %v56 = vmul.f32 %v55, 1.442695
    %v57 = vpow.pop %v56
    %v58 = vsel %vm39, %v57, 0.0
    %59 = vadd.xlane.f32.xlu0 %v58
    %v60 = vpop.xlane.xlu0 %59
    %v61 = vlog2.pop %v60
    %v62 = vmul.f32 %v61, 0.6931472
    %v63 = vsub.f32 %v55, %v62
    %v64 = vrcp.pop %v60
    %v65 = vmul.f32 %v57, %v64
    %v66 = vsub.f32 %v63, %v51
    %v67 = vmul.f32 %v65, %v66
    %v68 = vsel %vm39, %v67, 0.0
    %69 = vadd.xlane.f32.xlu0 %v68
    %v70 = vpop.xlane.xlu0 %69
    %vm71 = vcmask 7168
    %72 = vst.msk [vmem:[%s2] sm:$0xff] %vm71, %v70
    // Predicated region
    $region18: #{tpu_custom_call.1} parent=1 // pred_check
      _
    $region19: #{tpu_custom_call.1} parent=1 // pred_check_branch
      %74 = sbr.rel (0) target = $region21
    $region20: #{tpu_custom_call.1} parent=1 // pred_region
      _
    $region21: #{tpu_custom_call.1} parent=1 // pred_fallthru
      _
    // Predicated region
    $region22: #{tpu_custom_call.1} parent=1 // pred_check
      _
    $region23: #{tpu_custom_call.1} parent=1 // pred_check_branch
      %76 = sbr.rel (0) target = $region25
    $region24: #{tpu_custom_call.1} parent=1 // pred_region
      _
    $region25: #{tpu_custom_call.1} parent=1 // pred_fallthru
      _
    %77 = vsyncpa [#allocation3], 1
    %78 = vsyncpa [#allocation5], 1

</llo_original>
